<compile_context>
chip_gen: v5e
topology: v5e:2x2
jax: 0.10.0
libtpu: 0.0.40
codegen_flags: <defaults>
</compile_context>

<pallas_src>
import jax
import jax.numpy as jnp
from jax.experimental import pallas as pl
from jax.experimental.pallas import tpu as pltpu

LN_EPS = 1e-5
ENCODED_DIM = 64
DIM_FACTOR = 8
HIDDEN = ENCODED_DIM * DIM_FACTOR  # 512


def _layer_norm_f32(x_f32, gamma_f32, beta_f32):
    """LayerNorm over the last dim, computed entirely in f32."""
    mean = jnp.mean(x_f32, axis=-1, keepdims=True)
    centered = x_f32 - mean
    var = jnp.mean(centered * centered, axis=-1, keepdims=True)
    inv = jax.lax.rsqrt(var + LN_EPS)
    return centered * inv * gamma_f32 + beta_f32


def state_encoder_kernel(
    es_ref,    # (H, 64)    bf16  encoded_state (unpadded; lane-masked load is 1 vreg)
    w1_ref,    # (64, 512)  bf16  state_proj_1 weight^T
    w2_ref,    # (512, 256) bf16  state_proj_2 weight^T
    p_ref,     # (3, 768)   bf16  packed [b1|b2 ; g1|g2 ; be1|be2]
    out_ref,   # (H, 256)   bf16
):
    # Static ref-view slices at the 128-aligned 512 boundary: zero-cost.
    p1 = p_ref[:, 0:HIDDEN].astype(jnp.float32)   # (3, 512)  [b1; g1; be1]
    p2 = p_ref[:, HIDDEN:].astype(jnp.float32)    # (3, 256)  [b2; g2; be2]

    # ---- Linear 1 (MXU, f32 accumulation, K=64)
    h1 = jnp.dot(es_ref[...], w1_ref[...], preferred_element_type=jnp.float32)
    h1 = h1 + p1[0:1, :]                          # + bias1

    # ---- LayerNorm 1 + tanh, all in f32; single cast to bf16 for matmul2
    h1 = _layer_norm_f32(h1, p1[1:2, :], p1[2:3, :])
    h1_act = jnp.tanh(h1).astype(jnp.bfloat16)

    # ---- Linear 2 (MXU, f32 accumulation)
    h2 = jnp.dot(h1_act, w2_ref[...], preferred_element_type=jnp.float32)
    h2 = h2 + p2[0:1, :]                          # + bias2

    # ---- LayerNorm 2 in f32, single cast on store (256 lanes -> unmasked stores)
    out = _layer_norm_f32(h2, p2[1:2, :], p2[2:3, :])
    out_ref[...] = out.astype(jnp.bfloat16)


def pack_params(params):
    """One-time packing (call at init / cache the result; NOT per forward).

    Returns (es, w1, w2, slab) with slab = (3, 768) bf16 rows [bias; gamma; beta],
    lanes [layer1 (512) | layer2 (256)].
    """
    es, w1, b1, g1, be1, w2, b2, g2, be2 = params
    slab = jnp.concatenate(
        [jnp.stack([b1, g1, be1], axis=0),    # (3, 512)
         jnp.stack([b2, g2, be2], axis=0)],   # (3, 256)
        axis=1)                               # (3, 768)
    return (es, w1, w2, slab)


def state_encoder_forward(packed, n_head, head_size):
    """Fused StateEncoder forward on pre-packed params.

    Returns (n_head, head_size, head_size) bf16.
    """
    es, w1, w2, slab = packed
    hs2 = head_size * head_size

    cost = pl.CostEstimate(
        flops=2 * n_head * (es.shape[1] * HIDDEN + HIDDEN * hs2),
        transcendentals=n_head * HIDDEN,                      # tanh (+ a few rsqrt)
        bytes_accessed=2 * (es.size + w1.size + w2.size + slab.size + n_head * hs2),
    )

    vmem = pl.BlockSpec(memory_space=pltpu.MemorySpace.VMEM)
    out2d = pl.pallas_call(
        state_encoder_kernel,
        out_shape=jax.ShapeDtypeStruct((n_head, hs2), jnp.bfloat16),
        in_specs=[vmem] * 4,
        out_specs=vmem,
        cost_estimate=cost,
    )(es, w1, w2, slab)

    # Reshape glue (matches torch .reshape(n_head, head_size, head_size)).
    return out2d.reshape(n_head, head_size, head_size)


def init_params(key, n_head, head_size, encoded_dim=ENCODED_DIM, dim_factor=DIM_FACTOR):
    """Deterministic synthetic init matching the PyTorch module's shapes/inits."""
    hidden = encoded_dim * dim_factor           # 512
    out_dim = head_size * head_size             # head_size_a ** 2

    k_es, k_w1, k_b1, k_w2, k_b2 = jax.random.split(key, 5)

    # encoded_state ~ N(0, 0.02)
    es = (0.02 * jax.random.normal(k_es, (n_head, encoded_dim), jnp.float32)).astype(jnp.bfloat16)

    # nn.Linear default: U(-1/sqrt(fan_in), 1/sqrt(fan_in)); weights pre-transposed.
    bound1 = 1.0 / (encoded_dim ** 0.5)
    w1 = jax.random.uniform(k_w1, (encoded_dim, hidden), jnp.float32, -bound1, bound1).astype(jnp.bfloat16)
    b1 = jax.random.uniform(k_b1, (hidden,), jnp.float32, -bound1, bound1).astype(jnp.bfloat16)

    bound2 = 1.0 / (hidden ** 0.5)
    w2 = jax.random.uniform(k_w2, (hidden, out_dim), jnp.float32, -bound2, bound2).astype(jnp.bfloat16)
    b2 = jax.random.uniform(k_b2, (out_dim,), jnp.float32, -bound2, bound2).astype(jnp.bfloat16)

    # LayerNorm default: gamma=1, beta=0 (bf16 in the torch module)
    g1 = jnp.ones((hidden,), jnp.bfloat16)
    be1 = jnp.zeros((hidden,), jnp.bfloat16)
    g2 = jnp.ones((out_dim,), jnp.bfloat16)
    be2 = jnp.zeros((out_dim,), jnp.bfloat16)

    return (es, w1, b1, g1, be1, w2, b2, g2, be2)


def reference_forward(params, n_head, head_size):
    """Pure-JAX reference of the same math (f32 internals, bf16 output)."""
    es, w1, b1, g1, be1, w2, b2, g2, be2 = params
    h1 = jnp.dot(es, w1, preferred_element_type=jnp.float32) + b1.astype(jnp.float32)
    h1 = _layer_norm_f32(h1, g1.astype(jnp.float32), be1.astype(jnp.float32))
    h1a = jnp.tanh(h1).astype(jnp.bfloat16)
    h2 = jnp.dot(h1a, w2, preferred_element_type=jnp.float32) + b2.astype(jnp.float32)
    out = _layer_norm_f32(h2, g2.astype(jnp.float32), be2.astype(jnp.float32))
    return out.astype(jnp.bfloat16).reshape(n_head, head_size, head_size)


if __name__ == "__main__":
    # Small config consistent with the module: dim_att=32, head_size_a=16 -> n_head=2.
    head_size_a = 16
    dim_att = 32
    n_head = dim_att // head_size_a  # 2

    key = jax.random.PRNGKey(0)
    params = init_params(key, n_head, head_size_a)

    # One-time packing (hoisted out of the forward path).
    packed = jax.block_until_ready(pack_params(params))

    out = state_encoder_forward(packed, n_head, head_size_a)
    out = jax.block_until_ready(out)

    ref = jax.block_until_ready(reference_forward(params, n_head, head_size_a))

    assert out.shape == (n_head, head_size_a, head_size_a), out.shape
    assert out.dtype == jnp.bfloat16, out.dtype
    err = jnp.max(jnp.abs(out.astype(jnp.float32) - ref.astype(jnp.float32)))
    assert float(err) < 1e-1, f"mismatch vs reference: {float(err)}"

    print("KERNEL_OK")
</pallas_src>

<mosaic_0001>
module attributes {stable_mosaic.version = 11 : i64} {
  func.func @state_encoder_kernel(%arg0: memref<2x64xbf16, #tpu.memory_space<vmem>>, %arg1: memref<64x512xbf16, #tpu.memory_space<vmem>>, %arg2: memref<512x256xbf16, #tpu.memory_space<vmem>>, %arg3: memref<3x768xbf16, #tpu.memory_space<vmem>>, %arg4: memref<2x256xbf16, #tpu.memory_space<vmem>>) attributes {dimension_semantics = [], scalar_prefetch = 0 : i64, scratch_operands = 0 : i64, tpu.core_type = #tpu.core_type<tc>} {
    %c0 = arith.constant 0 : index
    %c0_0 = arith.constant 0 : index
    %0 = vector.load %arg3[%c0, %c0_0] : memref<3x768xbf16, #tpu.memory_space<vmem>>, vector<3x512xbf16>
    %1 = arith.extf %0 : vector<3x512xbf16> to vector<3x512xf32>
    %c0_1 = arith.constant 0 : index
    %c512 = arith.constant 512 : index
    %2 = vector.load %arg3[%c0_1, %c512] : memref<3x768xbf16, #tpu.memory_space<vmem>>, vector<3x256xbf16>
    %3 = arith.extf %2 : vector<3x256xbf16> to vector<3x256xf32>
    %c0_2 = arith.constant 0 : index
    %c0_3 = arith.constant 0 : index
    %4 = vector.load %arg0[%c0_2, %c0_3] : memref<2x64xbf16, #tpu.memory_space<vmem>>, vector<2x64xbf16>
    %c0_4 = arith.constant 0 : index
    %c0_5 = arith.constant 0 : index
    %5 = vector.load %arg1[%c0_4, %c0_5] : memref<64x512xbf16, #tpu.memory_space<vmem>>, vector<64x512xbf16>
    %cst = arith.constant dense<0.000000e+00> : vector<2x512xf32>
    %6 = tpu.matmul %4, %5, %cst {dimension_numbers = #tpu.dot_dimension_numbers<[1], [0], [0], [1], [0, 0, 1, 1], [], []>} : vector<2x64xbf16>, vector<64x512xbf16>, vector<2x512xf32> -> vector<2x512xf32>
    %7 = vector.extract_strided_slice %1 {offsets = [0, 0], sizes = [1, 512], strides = [1, 1]} : vector<3x512xf32> to vector<1x512xf32>
    %8 = vector.broadcast %7 : vector<1x512xf32> to vector<2x512xf32>
    %9 = arith.addf %6, %8 : vector<2x512xf32>
    %10 = vector.extract_strided_slice %1 {offsets = [1, 0], sizes = [1, 512], strides = [1, 1]} : vector<3x512xf32> to vector<1x512xf32>
    %11 = vector.extract_strided_slice %1 {offsets = [2, 0], sizes = [1, 512], strides = [1, 1]} : vector<3x512xf32> to vector<1x512xf32>
    %cst_6 = arith.constant dense<0.000000e+00> : vector<2xf32>
    %12 = vector.multi_reduction <add>, %9, %cst_6 [1] : vector<2x512xf32> to vector<2xf32>
    %13 = vector.shape_cast %12 : vector<2xf32> to vector<2x1xf32>
    %cst_7 = arith.constant 5.120000e+02 : f32
    %14 = vector.broadcast %cst_7 : f32 to vector<2x1xf32>
    %15 = arith.divf %13, %14 : vector<2x1xf32>
    %16 = vector.broadcast %15 : vector<2x1xf32> to vector<2x512xf32>
    %17 = arith.subf %9, %16 : vector<2x512xf32>
    %18 = arith.mulf %17, %17 : vector<2x512xf32>
    %cst_8 = arith.constant dense<0.000000e+00> : vector<2xf32>
    %19 = vector.multi_reduction <add>, %18, %cst_8 [1] : vector<2x512xf32> to vector<2xf32>
    %20 = vector.shape_cast %19 : vector<2xf32> to vector<2x1xf32>
    %cst_9 = arith.constant 5.120000e+02 : f32
    %21 = vector.broadcast %cst_9 : f32 to vector<2x1xf32>
    %22 = arith.divf %20, %21 : vector<2x1xf32>
    %cst_10 = arith.constant 9.99999974E-6 : f32
    %23 = vector.broadcast %cst_10 : f32 to vector<2x1xf32>
    %24 = arith.addf %22, %23 : vector<2x1xf32>
    %25 = math.rsqrt %24 : vector<2x1xf32>
    %26 = vector.broadcast %25 : vector<2x1xf32> to vector<2x512xf32>
    %27 = arith.mulf %17, %26 : vector<2x512xf32>
    %28 = vector.broadcast %10 : vector<1x512xf32> to vector<2x512xf32>
    %29 = arith.mulf %27, %28 : vector<2x512xf32>
    %30 = vector.broadcast %11 : vector<1x512xf32> to vector<2x512xf32>
    %31 = arith.addf %29, %30 : vector<2x512xf32>
    %32 = math.tanh %31 : vector<2x512xf32>
    %33 = arith.truncf %32 : vector<2x512xf32> to vector<2x512xbf16>
    %c0_11 = arith.constant 0 : index
    %c0_12 = arith.constant 0 : index
    %34 = vector.load %arg2[%c0_11, %c0_12] : memref<512x256xbf16, #tpu.memory_space<vmem>>, vector<512x256xbf16>
    %cst_13 = arith.constant dense<0.000000e+00> : vector<2x256xf32>
    %35 = tpu.matmul %33, %34, %cst_13 {dimension_numbers = #tpu.dot_dimension_numbers<[1], [0], [0], [1], [0, 0, 1, 1], [], []>} : vector<2x512xbf16>, vector<512x256xbf16>, vector<2x256xf32> -> vector<2x256xf32>
    %36 = vector.extract_strided_slice %3 {offsets = [0, 0], sizes = [1, 256], strides = [1, 1]} : vector<3x256xf32> to vector<1x256xf32>
    %37 = vector.broadcast %36 : vector<1x256xf32> to vector<2x256xf32>
    %38 = arith.addf %35, %37 : vector<2x256xf32>
    %39 = vector.extract_strided_slice %3 {offsets = [1, 0], sizes = [1, 256], strides = [1, 1]} : vector<3x256xf32> to vector<1x256xf32>
    %40 = vector.extract_strided_slice %3 {offsets = [2, 0], sizes = [1, 256], strides = [1, 1]} : vector<3x256xf32> to vector<1x256xf32>
    %cst_14 = arith.constant dense<0.000000e+00> : vector<2xf32>
    %41 = vector.multi_reduction <add>, %38, %cst_14 [1] : vector<2x256xf32> to vector<2xf32>
    %42 = vector.shape_cast %41 : vector<2xf32> to vector<2x1xf32>
    %cst_15 = arith.constant 2.560000e+02 : f32
    %43 = vector.broadcast %cst_15 : f32 to vector<2x1xf32>
    %44 = arith.divf %42, %43 : vector<2x1xf32>
    %45 = vector.broadcast %44 : vector<2x1xf32> to vector<2x256xf32>
    %46 = arith.subf %38, %45 : vector<2x256xf32>
    %47 = arith.mulf %46, %46 : vector<2x256xf32>
    %cst_16 = arith.constant dense<0.000000e+00> : vector<2xf32>
    %48 = vector.multi_reduction <add>, %47, %cst_16 [1] : vector<2x256xf32> to vector<2xf32>
    %49 = vector.shape_cast %48 : vector<2xf32> to vector<2x1xf32>
    %cst_17 = arith.constant 2.560000e+02 : f32
    %50 = vector.broadcast %cst_17 : f32 to vector<2x1xf32>
    %51 = arith.divf %49, %50 : vector<2x1xf32>
    %cst_18 = arith.constant 9.99999974E-6 : f32
    %52 = vector.broadcast %cst_18 : f32 to vector<2x1xf32>
    %53 = arith.addf %51, %52 : vector<2x1xf32>
    %54 = math.rsqrt %53 : vector<2x1xf32>
    %55 = vector.broadcast %54 : vector<2x1xf32> to vector<2x256xf32>
    %56 = arith.mulf %46, %55 : vector<2x256xf32>
    %57 = vector.broadcast %39 : vector<1x256xf32> to vector<2x256xf32>
    %58 = arith.mulf %56, %57 : vector<2x256xf32>
    %59 = vector.broadcast %40 : vector<1x256xf32> to vector<2x256xf32>
    %60 = arith.addf %58, %59 : vector<2x256xf32>
    %61 = arith.truncf %60 : vector<2x256xf32> to vector<2x256xbf16>
    %c0_19 = arith.constant 0 : index
    %c0_20 = arith.constant 0 : index
    %62 = vector.load %arg4[%c0_19, %c0_20] : memref<2x256xbf16, #tpu.memory_space<vmem>>, vector<2x256xbf16>
    tpu.vector_store %arg4[%c0_19, %c0_20], %61 {strides = array<i32>} : memref<2x256xbf16, #tpu.memory_space<vmem>>, vector<2x256xbf16>,
    return
  }
}

</mosaic_0001>

<llo_original>
// kernel: tpu_custom_call.1
$region0: #{tpu_custom_call.1}
  #allocation0 [shape = 'u32[]', space=smem, size = 0x4, offset = 0x4, fixed_abs, tag = 'smem constant byte address 0x4 - core index']
  #allocation1 [shape = 'u32[72,128]{1,0:T(1,128)}', space=vmem, size = 0x9000, scoped, tag = 'internal scratch']
  %s0 = inlined_call_operand.hbm [shape: bf16[2,64], index: 0, kind: input, shape index: {}]
  %s1 = inlined_call_operand.hbm [shape: bf16[64,512], index: 1, kind: input, shape index: {}]
  %s2 = inlined_call_operand.hbm [shape: bf16[512,256], index: 2, kind: input, shape index: {}]
  %s3 = inlined_call_operand.hbm [shape: bf16[3,768], index: 3, kind: input, shape index: {}]
  %s4 = inlined_call_operand.hbm [shape: bf16[2,256], index: 4, kind: output, shape index: {}]
  %s5 = sld [smem:[#allocation0]]
  $region42: #{tpu_custom_call.1} parent=0
    _
  %s7 = ssub.s32 1, %s5
  %s8 = scalar_select 0, %s7, %s5
  $region1: #{tpu_custom_call.1} parent=0
    #allocation2 [shape = 'u8[512]{0}', space=vmem, size = 0x400, scoped, tag = 'input window, operand 0, single buffered']
    #allocation3 [shape = 's32[1]{0}', space=sflag, size = 0x4, scoped, tag = 'scoped memory for tpu_custom_call.1']
    #allocation4 [shape = 's32[1]{0}', space=sflag, size = 0x4, scoped, tag = 'scoped memory for tpu_custom_call.1']
    #allocation5 [shape = 'u8[65536]{0}', space=vmem, size = 0x10000, scoped, tag = 'input window, operand 1, single buffered']
    #allocation6 [shape = 's32[1]{0}', space=sflag, size = 0x4, scoped, tag = 'scoped memory for tpu_custom_call.1']
    #allocation7 [shape = 'u8[262144]{0}', space=vmem, size = 0x40000, scoped, tag = 'input window, operand 2, single buffered']
    #allocation8 [shape = 'u8[6144]{0}', space=vmem, size = 0x1800, scoped, tag = 'input window, operand 3, single buffered']
    #allocation9 [shape = 's32[1]{0}', space=sflag, size = 0x4, scoped, tag = 'scoped memory for tpu_custom_call.1']
    #allocation10 [shape = 'u8[1024]{0}', space=vmem, size = 0x400, scoped, tag = 'output window, operand 0, single buffered']
    %9 = vsyncpa [#allocation3], 0
    %10 = vsyncpa [#allocation6], 0
    %11 = vsyncpa [#allocation9], 0
    %12 = vsyncpa [#allocation4], 0
    // Predicated region
    $region2: #{tpu_custom_call.1} parent=1 // pred_check
      _
    $region3: #{tpu_custom_call.1} parent=1 // pred_check_branch
      %14 = sbr.rel (0) target = $region5
    $region4: #{tpu_custom_call.1} parent=1 // pred_region
      %16 = vsyncadd [#allocation3], 0
      %s18 = sshll.u32 %s0, 4
      %s19 = int_to_ptr.hbm [resolvable:$true] %s18
      %s20 = sshll.u32 [#allocation2], 4
      %s21 = int_to_ptr.vmem [resolvable:$true] %s20
      %23 = dma.hbm_to_vmem [thread:$0]  %s19, 16, %s21, [#allocation3]
    $region5: #{tpu_custom_call.1} parent=1 // pred_fallthru
      _
    // Predicated region
    $region6: #{tpu_custom_call.1} parent=1 // pred_check
      _
    $region7: #{tpu_custom_call.1} parent=1 // pred_check_branch
      %25 = sbr.rel (0) target = $region9
    $region8: #{tpu_custom_call.1} parent=1 // pred_region
      %27 = vsyncadd [#allocation6], 0
      %s28 = sshll.u32 %s1, 4
      %s29 = int_to_ptr.hbm [resolvable:$true] %s28
      %s30 = sshll.u32 [#allocation5], 4
      %s31 = int_to_ptr.vmem [resolvable:$true] %s30
      %36 = dma.hbm_to_vmem [thread:$0]  %s29, 2048, %s31, [#allocation6], 256, 256, 16
    $region9: #{tpu_custom_call.1} parent=1 // pred_fallthru
      _
    // Predicated region
    $region10: #{tpu_custom_call.1} parent=1 // pred_check
      _
    $region11: #{tpu_custom_call.1} parent=1 // pred_check_branch
      %38 = sbr.rel (0) target = $region13
    $region12: #{tpu_custom_call.1} parent=1 // pred_region
      %40 = vsyncadd [#allocation6], 0
      %s41 = sshll.u32 %s2, 4
      %s42 = int_to_ptr.hbm [resolvable:$true] %s41
      %s43 = sshll.u32 [#allocation7], 4
      %s44 = int_to_ptr.vmem [resolvable:$true] %s43
      %49 = dma.hbm_to_vmem [thread:$0]  %s42, 8192, %s44, [#allocation6], 128, 128, 8
    $region13: #{tpu_custom_call.1} parent=1 // pred_fallthru
      _
    // Predicated region
    $region14: #{tpu_custom_call.1} parent=1 // pred_check
      _
    $region15: #{tpu_custom_call.1} parent=1 // pred_check_branch
      %51 = sbr.rel (0) target = $region17
    $region16: #{tpu_custom_call.1} parent=1 // pred_region
      %53 = vsyncadd [#allocation9], 0
      %s55 = sshll.u32 %s3, 4
      %s56 = int_to_ptr.hbm [resolvable:$true] %s55
      %s57 = sshll.u32 [#allocation8], 4
      %s58 = int_to_ptr.vmem [resolvable:$true] %s57
      %60 = dma.hbm_to_vmem [thread:$0]  %s56, 192, %s58, [#allocation9]
    $region17: #{tpu_custom_call.1} parent=1 // pred_fallthru
      _
    // Predicated region
    $region18: #{tpu_custom_call.1} parent=1 // pred_check
      _
    $region19: #{tpu_custom_call.1} parent=1 // pred_check_branch
      %62 = sbr.rel (0) target = $region21
    $region20: #{tpu_custom_call.1} parent=1 // pred_region
      %64 = dma.done [#allocation3], 16
    $region21: #{tpu_custom_call.1} parent=1 // pred_fallthru
      _
    // Predicated region
    $region22: #{tpu_custom_call.1} parent=1 // pred_check
      _
    $region23: #{tpu_custom_call.1} parent=1 // pred_check_branch
      %66 = sbr.rel (0) target = $region25
    $region24: #{tpu_custom_call.1} parent=1 // pred_region
      %68 = dma.done [#allocation6], 2048
    $region25: #{tpu_custom_call.1} parent=1 // pred_fallthru
      _
    // Predicated region
    $region26: #{tpu_custom_call.1} parent=1 // pred_check
      _
    $region27: #{tpu_custom_call.1} parent=1 // pred_check_branch
      %70 = sbr.rel (0) target = $region29
    $region28: #{tpu_custom_call.1} parent=1 // pred_region
      %72 = dma.done [#allocation6], 8192
    $region29: #{tpu_custom_call.1} parent=1 // pred_fallthru
      _
    // Predicated region
    $region30: #{tpu_custom_call.1} parent=1 // pred_check
      _
    $region31: #{tpu_custom_call.1} parent=1 // pred_check_branch
      %74 = sbr.rel (0) target = $region33
    $region32: #{tpu_custom_call.1} parent=1 // pred_region
      %76 = dma.done [#allocation9], 192
    $region33: #{tpu_custom_call.1} parent=1 // pred_fallthru
      _
    %v78 = vld [vmem:[#allocation8] sm:$0xff]
    %v79 = vunpack.c.l.bf16 %v78
    %v80 = vunpack.c.h.bf16 %v78
    %v81 = vld [vmem:[#allocation8 + $0x8] sm:$0xf]
    %v82 = vunpack.c.l.bf16 %v81
    %v83 = vld [vmem:[#allocation2] sm:$0x1]
    %v84 = vld [vmem:[#allocation5] sm:$0xff]
    %v85 = vld [vmem:[#allocation5 + $0x8] sm:$0xff]
    %v86 = vld [vmem:[#allocation5 + $0x10] sm:$0xff]
    %v87 = vld [vmem:[#allocation5 + $0x18] sm:$0xff]
    %v88 = vld [vmem:[#allocation5 + $0x20] sm:$0xff]
    %v89 = vld [vmem:[#allocation5 + $0x28] sm:$0xff]
    %v90 = vld [vmem:[#allocation5 + $0x30] sm:$0xff]
    %v91 = vld [vmem:[#allocation5 + $0x38] sm:$0xff]
    %v92 = vld [vmem:[#allocation5 + $0x40] sm:$0xff]
    %v93 = vld [vmem:[#allocation5 + $0x48] sm:$0xff]
    %v94 = vld [vmem:[#allocation5 + $0x50] sm:$0xff]
    %v95 = vld [vmem:[#allocation5 + $0x58] sm:$0xff]
    %v96 = vld [vmem:[#allocation5 + $0x60] sm:$0xff]
    %v97 = vld [vmem:[#allocation5 + $0x68] sm:$0xff]
    %v98 = vld [vmem:[#allocation5 + $0x70] sm:$0xff]
    %v99 = vld [vmem:[#allocation5 + $0x78] sm:$0xff]
    %v102 = vperm.slane %v79, 0
    %v103 = vperm.slane %v79, 4
    %v104 = vperm.slane %v80, 0
    %v105 = vperm.slane %v80, 4
    %v110 = vperm.slane %v102, 0
    %v111 = vperm.slane %v103, 0
    %v112 = vperm.slane %v104, 0
    %v113 = vperm.slane %v105, 0
    %v130 = vunpack.c.l.b16 %v84
    %v131 = vunpack.c.h.b16 %v84
    %v132 = vunpack.c.l.b16 %v85
    %v133 = vunpack.c.h.b16 %v85
    %v134 = vunpack.c.l.b16 %v86
    %v135 = vunpack.c.h.b16 %v86
    %v136 = vunpack.c.l.b16 %v87
    %v137 = vunpack.c.h.b16 %v87
    %v138 = vunpack.c.l.b16 %v88
    %v139 = vunpack.c.h.b16 %v88
    %v140 = vunpack.c.l.b16 %v89
    %v141 = vunpack.c.h.b16 %v89
    %v142 = vunpack.c.l.b16 %v90
    %v143 = vunpack.c.h.b16 %v90
    %v144 = vunpack.c.l.b16 %v91
    %v145 = vunpack.c.h.b16 %v91
    %v146 = vunpack.c.l.b16 %v92
    %v147 = vunpack.c.h.b16 %v92
    %v148 = vunpack.c.l.b16 %v93
    %v149 = vunpack.c.h.b16 %v93
    %v150 = vunpack.c.l.b16 %v94
    %v151 = vunpack.c.h.b16 %v94
    %v152 = vunpack.c.l.b16 %v95
    %v153 = vunpack.c.h.b16 %v95
    %v154 = vunpack.c.l.b16 %v96
    %v155 = vunpack.c.h.b16 %v96
    %v156 = vunpack.c.l.b16 %v97
    %v157 = vunpack.c.h.b16 %v97
    %v158 = vunpack.c.l.b16 %v98
    %v159 = vunpack.c.h.b16 %v98
    %v160 = vunpack.c.l.b16 %v99
    %v161 = vunpack.c.h.b16 %v99
    %v162 = vpack.c.b16 %v134, %v130
    %v163 = vpack.c.b16 %v135, %v131
    %v164 = vpack.c.b16 %v136, %v132
    %v165 = vpack.c.b16 %v137, %v133
    %v166 = vpack.c.b16 %v142, %v138
    %v167 = vpack.c.b16 %v143, %v139
    %v168 = vpack.c.b16 %v144, %v140
    %v169 = vpack.c.b16 %v145, %v141
    %v170 = vpack.c.b16 %v150, %v146
    %v171 = vpack.c.b16 %v151, %v147
    %v172 = vpack.c.b16 %v152, %v148
    %v173 = vpack.c.b16 %v153, %v149
    %v174 = vpack.c.b16 %v158, %v154
    %v175 = vpack.c.b16 %v159, %v155
    %v176 = vpack.c.b16 %v160, %v156
    %v177 = vpack.c.b16 %v161, %v157
    %vm194 = vcmask 523264
    %v196 = vsel %vm194, %v83, 0
    %198 = vmatpush.bf16.msra.mxu0 0
    %199 = vmatpush.bf16.msra.mxu0 0
    %200 = vmatpush.bf16.msra.mxu0 0
    %201 = vmatpush.bf16.msra.mxu0 0
    %202 = vmatpush.bf16.msra.mxu0 %v174
    %203 = vmatpush.bf16.msra.mxu0 %v170
    %204 = vmatpush.bf16.msra.mxu0 %v166
    %205 = vmatpush.bf16.msra.mxu0 %v162
    %206 = vmatmul.bf16.gmra.mxu0 %v196
    %v207 = vpop.f32.mrf.mxu0
    %v208 = vadd.f32 %v110, %v207
    %v209 = vpop.f32.mrf.mxu0
    %210 = vdwg.mxu0
    %211 = vmatpush.bf16.msra.mxu0 0
    %212 = vmatpush.bf16.msra.mxu0 0
    %213 = vmatpush.bf16.msra.mxu0 0
    %214 = vmatpush.bf16.msra.mxu0 0
    %215 = vmatpush.bf16.msra.mxu0 %v175
    %216 = vmatpush.bf16.msra.mxu0 %v171
    %217 = vmatpush.bf16.msra.mxu0 %v167
    %218 = vmatpush.bf16.msra.mxu0 %v163
    %219 = vmatmul.bf16.gmra.mxu0 %v196
    %v220 = vpop.f32.mrf.mxu0
    %v221 = vadd.f32 %v111, %v220
    %v222 = vpop.f32.mrf.mxu0
    %223 = vdwg.mxu0
    %224 = vmatpush.bf16.msra.mxu0 0
    %225 = vmatpush.bf16.msra.mxu0 0
    %226 = vmatpush.bf16.msra.mxu0 0
    %227 = vmatpush.bf16.msra.mxu0 0
    %228 = vmatpush.bf16.msra.mxu0 %v176
    %229 = vmatpush.bf16.msra.mxu0 %v172
    %230 = vmatpush.bf16.msra.mxu0 %v168
    %231 = vmatpush.bf16.msra.mxu0 %v164
    %232 = vmatmul.bf16.gmra.mxu0 %v196
    %v233 = vpop.f32.mrf.mxu0
    %v234 = vadd.f32 %v112, %v233
    %v235 = vpop.f32.mrf.mxu0
    %236 = vdwg.mxu0
    %237 = vmatpush.bf16.msra.mxu0 0
    %238 = vmatpush.bf16.msra.mxu0 0
    %239 = vmatpush.bf16.msra.mxu0 0
    %240 = vmatpush.bf16.msra.mxu0 0
    %241 = vmatpush.bf16.msra.mxu0 %v177
    %242 = vmatpush.bf16.msra.mxu0 %v173
    %243 = vmatpush.bf16.msra.mxu0 %v169
    %244 = vmatpush.bf16.msra.mxu0 %v165
    %245 = vmatmul.bf16.gmra.mxu0 %v196
    %v246 = vpop.f32.mrf.mxu0
    %v247 = vadd.f32 %v113, %v246
    %v248 = vpop.f32.mrf.mxu0
    %249 = vdwg.mxu0
    %vm250 = vcmask 1041408
    %v251 = vsel %vm250, %v208, 0.0
    %v252 = vsel %vm250, %v221, 0.0
    %v253 = vadd.f32 %v251, %v252
    %v254 = vsel %vm250, %v234, 0.0
    %v255 = vadd.f32 %v253, %v254
    %v256 = vsel %vm250, %v247, 0.0
    %v257 = vadd.f32 %v255, %v256
    %258 = vadd.xlane.f32.xlu0 %v257
    %v259 = vpop.xlane.xlu0 %258
    %v260 = vrcp.pop 512.0
    %v261 = vmul.f32 512.0, %v260
    %v262 = vsub.f32 1.0, %v261
    %v263 = vmul.f32 %v260, %v262
    %v264 = vadd.f32 %v260, %v263
    %vm265 = vweird.f32 %v260
    %v266 = vsel %vm265, %v260, %v264
    %v267 = vmul.f32 %v259, %v266
    %v268 = vsub.f32 %v208, %v267
    %v269 = vsub.f32 %v221, %v267
    %v270 = vsub.f32 %v234, %v267
    %v271 = vsub.f32 %v247, %v267
    %v272 = vmul.f32 %v268, %v268
    %v273 = vmul.f32 %v269, %v269
    %v274 = vmul.f32 %v270, %v270
    %v275 = vmul.f32 %v271, %v271
    %v276 = vsel %vm250, %v272, 0.0
    %v277 = vsel %vm250, %v273, 0.0
    %v278 = vadd.f32 %v276, %v277
    %v279 = vsel %vm250, %v274, 0.0
    %v280 = vadd.f32 %v278, %v279
    %v281 = vsel %vm250, %v275, 0.0
    %v282 = vadd.f32 %v280, %v281
    %283 = vadd.xlane.f32.xlu0 %v282
    %v284 = vpop.xlane.xlu0 %283
    %v285 = vmul.f32 %v284, %v266
    %v286 = vadd.f32 %v285, 1e-05
    %v287 = vrsqrt.pop %v286
    %v288 = vmul.f32 %v287, %v286
    %v289 = vmul.f32 %v288, %v287
    %v290 = vmul.f32 0.5, %v289
    %v291 = vsub.f32 1.5, %v290
    %v292 = vmul.f32 %v287, %v291
    %vm293 = vweird.f32 %v286
    %vm294 = vweird.f32 %v287
    %vm295 = vmor %vm293, %vm294
    %v296 = vsel %vm295, %v287, %v292
    %v297 = vmul.f32 %v268, %v296
    %v298 = vmul.f32 %v269, %v296
    %v299 = vmul.f32 %v270, %v296
    %v300 = vmul.f32 %v271, %v296
    %v301 = vperm.slane %v79, 1
    %v302 = vperm.slane %v79, 5
    %v303 = vperm.slane %v80, 1
    %v304 = vperm.slane %v80, 5
    %v309 = vperm.slane %v301, 1
    %v310 = vperm.slane %v302, 1
    %v311 = vperm.slane %v303, 1
    %v312 = vperm.slane %v304, 1
    %v313 = vmul.f32 %v297, %v309
    %v314 = vmul.f32 %v298, %v310
    %v315 = vmul.f32 %v299, %v311
    %v316 = vmul.f32 %v300, %v312
    %v317 = vperm.slane %v79, 2
    %v318 = vperm.slane %v79, 6
    %v319 = vperm.slane %v80, 2
    %v320 = vperm.slane %v80, 6
    %v325 = vperm.slane %v317, 2
    %v326 = vperm.slane %v318, 2
    %v327 = vperm.slane %v319, 2
    %v328 = vperm.slane %v320, 2
    %v329 = vadd.f32 %v313, %v325
    %v330 = vadd.f32 %v314, %v326
    %v331 = vadd.f32 %v315, %v327
    %v332 = vadd.f32 %v316, %v328
    %v333 = vtanh.pop %v329
    %v334 = vtanh.pop %v330
    %v335 = vtanh.pop %v331
    %v336 = vtanh.pop %v332
    %v337 = vpack.c.bf16 %v333, %v333
    %v338 = vpack.c.bf16 %v334, %v334
    %v339 = vpack.c.bf16 %v335, %v335
    %v340 = vpack.c.bf16 %v336, %v336
    %v341 = vld [vmem:[#allocation7] sm:$0xff]
    %v342 = vld [vmem:[#allocation7 + $0x8] sm:$0xff]
    %v343 = vld [vmem:[#allocation7 + $0x10] sm:$0xff]
    %v344 = vld [vmem:[#allocation7 + $0x18] sm:$0xff]
    %v345 = vld [vmem:[#allocation7 + $0x20] sm:$0xff]
    %v346 = vld [vmem:[#allocation7 + $0x28] sm:$0xff]
    %v347 = vld [vmem:[#allocation7 + $0x30] sm:$0xff]
    %v348 = vld [vmem:[#allocation7 + $0x38] sm:$0xff]
    %v349 = vld [vmem:[#allocation7 + $0x40] sm:$0xff]
    %v350 = vld [vmem:[#allocation7 + $0x48] sm:$0xff]
    %v351 = vld [vmem:[#allocation7 + $0x50] sm:$0xff]
    %v352 = vld [vmem:[#allocation7 + $0x58] sm:$0xff]
    %v353 = vld [vmem:[#allocation7 + $0x60] sm:$0xff]
    %v354 = vld [vmem:[#allocation7 + $0x68] sm:$0xff]
    %v355 = vld [vmem:[#allocation7 + $0x70] sm:$0xff]
    %v356 = vld [vmem:[#allocation7 + $0x78] sm:$0xff]
    %v357 = vld [vmem:[#allocation7 + $0x80] sm:$0xff]
    %v358 = vld [vmem:[#allocation7 + $0x88] sm:$0xff]
    %v359 = vld [vmem:[#allocation7 + $0x90] sm:$0xff]
    %v360 = vld [vmem:[#allocation7 + $0x98] sm:$0xff]
    %v361 = vld [vmem:[#allocation7 + $0xa0] sm:$0xff]
    %v362 = vld [vmem:[#allocation7 + $0xa8] sm:$0xff]
    %v363 = vld [vmem:[#allocation7 + $0xb0] sm:$0xff]
    %v364 = vld [vmem:[#allocation7 + $0xb8] sm:$0xff]
    %v365 = vld [vmem:[#allocation7 + $0xc0] sm:$0xff]
    %v366 = vld [vmem:[#allocation7 + $0xc8] sm:$0xff]
    %v367 = vld [vmem:[#allocation7 + $0xd0] sm:$0xff]
    %v368 = vld [vmem:[#allocation7 + $0xd8] sm:$0xff]
    %v369 = vld [vmem:[#allocation7 + $0xe0] sm:$0xff]
    %v370 = vld [vmem:[#allocation7 + $0xe8] sm:$0xff]
    %v371 = vld [vmem:[#allocation7 + $0xf0] sm:$0xff]
    %v372 = vld [vmem:[#allocation7 + $0xf8] sm:$0xff]
    %v373 = vld [vmem:[#allocation7 + $0x100] sm:$0xff]
    %v374 = vld [vmem:[#allocation7 + $0x108] sm:$0xff]
    %v375 = vld [vmem:[#allocation7 + $0x110] sm:$0xff]
    %v376 = vld [vmem:[#allocation7 + $0x118] sm:$0xff]
    %v377 = vld [vmem:[#allocation7 + $0x120] sm:$0xff]
    %v378 = vld [vmem:[#allocation7 + $0x128] sm:$0xff]
    %v379 = vld [vmem:[#allocation7 + $0x130] sm:$0xff]
    %v380 = vld [vmem:[#allocation7 + $0x138] sm:$0xff]
    %v381 = vld [vmem:[#allocation7 + $0x140] sm:$0xff]
    %v382 = vld [vmem:[#allocation7 + $0x148] sm:$0xff]
    %v383 = vld [vmem:[#allocation7 + $0x150] sm:$0xff]
    %v384 = vld [vmem:[#allocation7 + $0x158] sm:$0xff]
    %v385 = vld [vmem:[#allocation7 + $0x160] sm:$0xff]
    %v386 = vld [vmem:[#allocation7 + $0x168] sm:$0xff]
    %v387 = vld [vmem:[#allocation7 + $0x170] sm:$0xff]
    %v388 = vld [vmem:[#allocation7 + $0x178] sm:$0xff]
    %v389 = vld [vmem:[#allocation7 + $0x180] sm:$0xff]
    %v390 = vld [vmem:[#allocation7 + $0x188] sm:$0xff]
    %v391 = vld [vmem:[#allocation7 + $0x190] sm:$0xff]
    %v392 = vld [vmem:[#allocation7 + $0x198] sm:$0xff]
    %v393 = vld [vmem:[#allocation7 + $0x1a0] sm:$0xff]
    %v394 = vld [vmem:[#allocation7 + $0x1a8] sm:$0xff]
    %v395 = vld [vmem:[#allocation7 + $0x1b0] sm:$0xff]
    %v396 = vld [vmem:[#allocation7 + $0x1b8] sm:$0xff]
    %v397 = vld [vmem:[#allocation7 + $0x1c0] sm:$0xff]
    %v398 = vld [vmem:[#allocation7 + $0x1c8] sm:$0xff]
    %v399 = vld [vmem:[#allocation7 + $0x1d0] sm:$0xff]
    %v400 = vld [vmem:[#allocation7 + $0x1d8] sm:$0xff]
    %v401 = vld [vmem:[#allocation7 + $0x1e0] sm:$0xff]
    %v402 = vld [vmem:[#allocation7 + $0x1e8] sm:$0xff]
    %v403 = vld [vmem:[#allocation7 + $0x1f0] sm:$0xff]
    %v404 = vld [vmem:[#allocation7 + $0x1f8] sm:$0xff]
    %v406 = vperm.slane %v82, 0
    %v407 = vperm.slane %v82, 4
    %v410 = vperm.slane %v406, 0
    %v411 = vperm.slane %v407, 0
    %v476 = vunpack.c.l.b16 %v341
    %v477 = vunpack.c.h.b16 %v341
    %v478 = vunpack.c.l.b16 %v342
    %v479 = vunpack.c.h.b16 %v342
    %v480 = vunpack.c.l.b16 %v343
    %v481 = vunpack.c.h.b16 %v343
    %v482 = vunpack.c.l.b16 %v344
    %v483 = vunpack.c.h.b16 %v344
    %v484 = vunpack.c.l.b16 %v345
    %v485 = vunpack.c.h.b16 %v345
    %v486 = vunpack.c.l.b16 %v346
    %v487 = vunpack.c.h.b16 %v346
    %v488 = vunpack.c.l.b16 %v347
    %v489 = vunpack.c.h.b16 %v347
    %v490 = vunpack.c.l.b16 %v348
    %v491 = vunpack.c.h.b16 %v348
    %v492 = vunpack.c.l.b16 %v349
    %v493 = vunpack.c.h.b16 %v349
    %v494 = vunpack.c.l.b16 %v350
    %v495 = vunpack.c.h.b16 %v350
    %v496 = vunpack.c.l.b16 %v351
    %v497 = vunpack.c.h.b16 %v351
    %v498 = vunpack.c.l.b16 %v352
    %v499 = vunpack.c.h.b16 %v352
    %v500 = vunpack.c.l.b16 %v353
    %v501 = vunpack.c.h.b16 %v353
    %v502 = vunpack.c.l.b16 %v354
    %v503 = vunpack.c.h.b16 %v354
    %v504 = vunpack.c.l.b16 %v355
    %v505 = vunpack.c.h.b16 %v355
    %v506 = vunpack.c.l.b16 %v356
    %v507 = vunpack.c.h.b16 %v356
    %v508 = vunpack.c.l.b16 %v357
    %v509 = vunpack.c.h.b16 %v357
    %v510 = vunpack.c.l.b16 %v358
    %v511 = vunpack.c.h.b16 %v358
    %v512 = vunpack.c.l.b16 %v359
    %v513 = vunpack.c.h.b16 %v359
    %v514 = vunpack.c.l.b16 %v360
    %v515 = vunpack.c.h.b16 %v360
    %v516 = vunpack.c.l.b16 %v361
    %v517 = vunpack.c.h.b16 %v361
    %v518 = vunpack.c.l.b16 %v362
    %v519 = vunpack.c.h.b16 %v362
    %v520 = vunpack.c.l.b16 %v363
    %v521 = vunpack.c.h.b16 %v363
    %v522 = vunpack.c.l.b16 %v364
    %v523 = vunpack.c.h.b16 %v364
    %v524 = vunpack.c.l.b16 %v365
    %v525 = vunpack.c.h.b16 %v365
    %v526 = vunpack.c.l.b16 %v366
    %v527 = vunpack.c.h.b16 %v366
    %v528 = vunpack.c.l.b16 %v367
    %v529 = vunpack.c.h.b16 %v367
    %v530 = vunpack.c.l.b16 %v368
    %v531 = vunpack.c.h.b16 %v368
    %v532 = vunpack.c.l.b16 %v369
    %v533 = vunpack.c.h.b16 %v369
    %v534 = vunpack.c.l.b16 %v370
    %v535 = vunpack.c.h.b16 %v370
    %v536 = vunpack.c.l.b16 %v371
    %v537 = vunpack.c.h.b16 %v371
    %v538 = vunpack.c.l.b16 %v372
    %v539 = vunpack.c.h.b16 %v372
    %v540 = vunpack.c.l.b16 %v373
    %v541 = vunpack.c.h.b16 %v373
    %v542 = vunpack.c.l.b16 %v374
    %v543 = vunpack.c.h.b16 %v374
    %v544 = vunpack.c.l.b16 %v375
    %v545 = vunpack.c.h.b16 %v375
    %v546 = vunpack.c.l.b16 %v376
    %v547 = vunpack.c.h.b16 %v376
    %v548 = vunpack.c.l.b16 %v377
    %v549 = vunpack.c.h.b16 %v377
    %v550 = vunpack.c.l.b16 %v378
    %v551 = vunpack.c.h.b16 %v378
    %v552 = vunpack.c.l.b16 %v379
    %v553 = vunpack.c.h.b16 %v379
    %v554 = vunpack.c.l.b16 %v380
    %v555 = vunpack.c.h.b16 %v380
    %v556 = vunpack.c.l.b16 %v381
    %v557 = vunpack.c.h.b16 %v381
    %v558 = vunpack.c.l.b16 %v382
    %v559 = vunpack.c.h.b16 %v382
    %v560 = vunpack.c.l.b16 %v383
    %v561 = vunpack.c.h.b16 %v383
    %v562 = vunpack.c.l.b16 %v384
    %v563 = vunpack.c.h.b16 %v384
    %v564 = vunpack.c.l.b16 %v385
    %v565 = vunpack.c.h.b16 %v385
    %v566 = vunpack.c.l.b16 %v386
    %v567 = vunpack.c.h.b16 %v386
    %v568 = vunpack.c.l.b16 %v387
    %v569 = vunpack.c.h.b16 %v387
    %v570 = vunpack.c.l.b16 %v388
    %v571 = vunpack.c.h.b16 %v388
    %v572 = vunpack.c.l.b16 %v389
    %v573 = vunpack.c.h.b16 %v389
    %v574 = vunpack.c.l.b16 %v390
    %v575 = vunpack.c.h.b16 %v390
    %v576 = vunpack.c.l.b16 %v391
    %v577 = vunpack.c.h.b16 %v391
    %v578 = vunpack.c.l.b16 %v392
    %v579 = vunpack.c.h.b16 %v392
    %v580 = vunpack.c.l.b16 %v393
    %v581 = vunpack.c.h.b16 %v393
    %v582 = vunpack.c.l.b16 %v394
    %v583 = vunpack.c.h.b16 %v394
    %v584 = vunpack.c.l.b16 %v395
    %v585 = vunpack.c.h.b16 %v395
    %v586 = vunpack.c.l.b16 %v396
    %v587 = vunpack.c.h.b16 %v396
    %v588 = vunpack.c.l.b16 %v397
    %v589 = vunpack.c.h.b16 %v397
    %v590 = vunpack.c.l.b16 %v398
    %v591 = vunpack.c.h.b16 %v398
    %v592 = vunpack.c.l.b16 %v399
    %v593 = vunpack.c.h.b16 %v399
    %v594 = vunpack.c.l.b16 %v400
    %v595 = vunpack.c.h.b16 %v400
    %v596 = vunpack.c.l.b16 %v401
    %v597 = vunpack.c.h.b16 %v401
    %v598 = vunpack.c.l.b16 %v402
    %v599 = vunpack.c.h.b16 %v402
    %v600 = vunpack.c.l.b16 %v403
    %v601 = vunpack.c.h.b16 %v403
    %v602 = vunpack.c.l.b16 %v404
    %v603 = vunpack.c.h.b16 %v404
    %v604 = vpack.c.b16 %v478, %v476
    %v605 = vpack.c.b16 %v479, %v477
    %v606 = vpack.c.b16 %v482, %v480
    %v607 = vpack.c.b16 %v483, %v481
    %v608 = vpack.c.b16 %v486, %v484
    %v609 = vpack.c.b16 %v487, %v485
    %v610 = vpack.c.b16 %v490, %v488
    %v611 = vpack.c.b16 %v491, %v489
    %v612 = vpack.c.b16 %v494, %v492
    %v613 = vpack.c.b16 %v495, %v493
    %v614 = vpack.c.b16 %v498, %v496
    %v615 = vpack.c.b16 %v499, %v497
    %v616 = vpack.c.b16 %v502, %v500
    %v617 = vpack.c.b16 %v503, %v501
    %v618 = vpack.c.b16 %v506, %v504
    %v619 = vpack.c.b16 %v507, %v505
    %v620 = vpack.c.b16 %v510, %v508
    %v621 = vpack.c.b16 %v511, %v509
    %v622 = vpack.c.b16 %v514, %v512
    %v623 = vpack.c.b16 %v515, %v513
    %v624 = vpack.c.b16 %v518, %v516
    %v625 = vpack.c.b16 %v519, %v517
    %v626 = vpack.c.b16 %v522, %v520
    %v627 = vpack.c.b16 %v523, %v521
    %v628 = vpack.c.b16 %v526, %v524
    %v629 = vpack.c.b16 %v527, %v525
    %v630 = vpack.c.b16 %v530, %v528
    %v631 = vpack.c.b16 %v531, %v529
    %v632 = vpack.c.b16 %v534, %v532
    %v633 = vpack.c.b16 %v535, %v533
    %v634 = vpack.c.b16 %v538, %v536
    %v635 = vpack.c.b16 %v539, %v537
    %v636 = vpack.c.b16 %v542, %v540
    %v637 = vpack.c.b16 %v543, %v541
    %v638 = vpack.c.b16 %v546, %v544
    %v639 = vpack.c.b16 %v547, %v545
    %v640 = vpack.c.b16 %v550, %v548
    %v641 = vpack.c.b16 %v551, %v549
    %v642 = vpack.c.b16 %v554, %v552
    %v643 = vpack.c.b16 %v555, %v553
    %v644 = vpack.c.b16 %v558, %v556
    %v645 = vpack.c.b16 %v559, %v557
    %v646 = vpack.c.b16 %v562, %v560
    %v647 = vpack.c.b16 %v563, %v561
    %v648 = vpack.c.b16 %v566, %v564
    %v649 = vpack.c.b16 %v567, %v565
    %v650 = vpack.c.b16 %v570, %v568
    %v651 = vpack.c.b16 %v571, %v569
    %v652 = vpack.c.b16 %v574, %v572
    %v653 = vpack.c.b16 %v575, %v573
    %v654 = vpack.c.b16 %v578, %v576
    %v655 = vpack.c.b16 %v579, %v577
    %v656 = vpack.c.b16 %v582, %v580
    %v657 = vpack.c.b16 %v583, %v581
    %v658 = vpack.c.b16 %v586, %v584
    %v659 = vpack.c.b16 %v587, %v585
    %v660 = vpack.c.b16 %v590, %v588
    %v661 = vpack.c.b16 %v591, %v589
    %v662 = vpack.c.b16 %v594, %v592
    %v663 = vpack.c.b16 %v595, %v593
    %v664 = vpack.c.b16 %v598, %v596
    %v665 = vpack.c.b16 %v599, %v597
    %v666 = vpack.c.b16 %v602, %v600
    %v667 = vpack.c.b16 %v603, %v601
    %732 = vmatpush.bf16.msra.mxu0 %v618
    %733 = vmatpush.bf16.msra.mxu0 %v616
    %734 = vmatpush.bf16.msra.mxu0 %v614
    %735 = vmatpush.bf16.msra.mxu0 %v612
    %736 = vmatpush.bf16.msra.mxu0 %v610
    %737 = vmatpush.bf16.msra.mxu0 %v608
    %738 = vmatpush.bf16.msra.mxu0 %v606
    %739 = vmatpush.bf16.msra.mxu0 %v604
    %740 = vmatmul.bf16.gmra.mxu0 %v337
    %v741 = vpop.f32.mrf.mxu0
    %v742 = vadd.f32 %v410, %v741
    %v743 = vpop.f32.mrf.mxu0
    %744 = vdwg.mxu0
    %745 = vmatpush.bf16.msra.mxu0 %v634
    %746 = vmatpush.bf16.msra.mxu0 %v632
    %747 = vmatpush.bf16.msra.mxu0 %v630
    %748 = vmatpush.bf16.msra.mxu0 %v628
    %749 = vmatpush.bf16.msra.mxu0 %v626
    %750 = vmatpush.bf16.msra.mxu0 %v624
    %751 = vmatpush.bf16.msra.mxu0 %v622
    %752 = vmatpush.bf16.msra.mxu0 %v620
    %753 = vmatmul.bf16.gmra.mxu0 %v338
    %v754 = vpop.f32.mrf.mxu0
    %v755 = vadd.f32 %v742, %v754
    %v756 = vpop.f32.mrf.mxu0
    %757 = vdwg.mxu0
    %758 = vmatpush.bf16.msra.mxu0 %v650
    %759 = vmatpush.bf16.msra.mxu0 %v648
    %760 = vmatpush.bf16.msra.mxu0 %v646
    %761 = vmatpush.bf16.msra.mxu0 %v644
    %762 = vmatpush.bf16.msra.mxu0 %v642
    %763 = vmatpush.bf16.msra.mxu0 %v640
    %764 = vmatpush.bf16.msra.mxu0 %v638
    %765 = vmatpush.bf16.msra.mxu0 %v636
    %766 = vmatmul.bf16.gmra.mxu0 %v339
    %v767 = vpop.f32.mrf.mxu0
    %v768 = vadd.f32 %v755, %v767
    %v769 = vpop.f32.mrf.mxu0
    %770 = vdwg.mxu0
    %771 = vmatpush.bf16.msra.mxu0 %v666
    %772 = vmatpush.bf16.msra.mxu0 %v664
    %773 = vmatpush.bf16.msra.mxu0 %v662
    %774 = vmatpush.bf16.msra.mxu0 %v660
    %775 = vmatpush.bf16.msra.mxu0 %v658
    %776 = vmatpush.bf16.msra.mxu0 %v656
    %777 = vmatpush.bf16.msra.mxu0 %v654
    %778 = vmatpush.bf16.msra.mxu0 %v652
    %779 = vmatmul.bf16.gmra.mxu0 %v340
    %v780 = vpop.f32.mrf.mxu0
    %v781 = vadd.f32 %v768, %v780
    %v782 = vpop.f32.mrf.mxu0
    %783 = vdwg.mxu0
    %784 = vmatpush.bf16.msra.mxu0 %v619
    %785 = vmatpush.bf16.msra.mxu0 %v617
    %786 = vmatpush.bf16.msra.mxu0 %v615
    %787 = vmatpush.bf16.msra.mxu0 %v613
    %788 = vmatpush.bf16.msra.mxu0 %v611
    %789 = vmatpush.bf16.msra.mxu0 %v609
    %790 = vmatpush.bf16.msra.mxu0 %v607
    %791 = vmatpush.bf16.msra.mxu0 %v605
    %792 = vmatmul.bf16.gmra.mxu0 %v337
    %v793 = vpop.f32.mrf.mxu0
    %v794 = vadd.f32 %v411, %v793
    %v795 = vpop.f32.mrf.mxu0
    %796 = vdwg.mxu0
    %797 = vmatpush.bf16.msra.mxu0 %v635
    %798 = vmatpush.bf16.msra.mxu0 %v633
    %799 = vmatpush.bf16.msra.mxu0 %v631
    %800 = vmatpush.bf16.msra.mxu0 %v629
    %801 = vmatpush.bf16.msra.mxu0 %v627
    %802 = vmatpush.bf16.msra.mxu0 %v625
    %803 = vmatpush.bf16.msra.mxu0 %v623
    %804 = vmatpush.bf16.msra.mxu0 %v621
    %805 = vmatmul.bf16.gmra.mxu0 %v338
    %v806 = vpop.f32.mrf.mxu0
    %v807 = vadd.f32 %v794, %v806
    %v808 = vpop.f32.mrf.mxu0
    %809 = vdwg.mxu0
    %810 = vmatpush.bf16.msra.mxu0 %v651
    %811 = vmatpush.bf16.msra.mxu0 %v649
    %812 = vmatpush.bf16.msra.mxu0 %v647
    %813 = vmatpush.bf16.msra.mxu0 %v645
    %814 = vmatpush.bf16.msra.mxu0 %v643
    %815 = vmatpush.bf16.msra.mxu0 %v641
    %816 = vmatpush.bf16.msra.mxu0 %v639
    %817 = vmatpush.bf16.msra.mxu0 %v637
    %818 = vmatmul.bf16.gmra.mxu0 %v339
    %v819 = vpop.f32.mrf.mxu0
    %v820 = vadd.f32 %v807, %v819
    %v821 = vpop.f32.mrf.mxu0
    %822 = vdwg.mxu0
    %823 = vmatpush.bf16.msra.mxu0 %v667
    %824 = vmatpush.bf16.msra.mxu0 %v665
    %825 = vmatpush.bf16.msra.mxu0 %v663
    %826 = vmatpush.bf16.msra.mxu0 %v661
    %827 = vmatpush.bf16.msra.mxu0 %v659
    %828 = vmatpush.bf16.msra.mxu0 %v657
    %829 = vmatpush.bf16.msra.mxu0 %v655
    %830 = vmatpush.bf16.msra.mxu0 %v653
    %831 = vmatmul.bf16.gmra.mxu0 %v340
    %v832 = vpop.f32.mrf.mxu0
    %v833 = vadd.f32 %v820, %v832
    %v834 = vpop.f32.mrf.mxu0
    %835 = vdwg.mxu0
    %v836 = vsel %vm250, %v781, 0.0
    %v837 = vsel %vm250, %v833, 0.0
    %v838 = vadd.f32 %v836, %v837
    %839 = vadd.xlane.f32.xlu0 %v838
    %v840 = vpop.xlane.xlu0 %839
    %v841 = vrcp.pop 256.0
    %v842 = vmul.f32 256.0, %v841
    %v843 = vsub.f32 1.0, %v842
    %v844 = vmul.f32 %v841, %v843
    %v845 = vadd.f32 %v841, %v844
    %vm846 = vweird.f32 %v841
    %v847 = vsel %vm846, %v841, %v845
    %v848 = vmul.f32 %v840, %v847
    %v849 = vsub.f32 %v781, %v848
    %v850 = vsub.f32 %v833, %v848
    %v851 = vmul.f32 %v849, %v849
    %v852 = vmul.f32 %v850, %v850
    %v853 = vsel %vm250, %v851, 0.0
    %v854 = vsel %vm250, %v852, 0.0
    %v855 = vadd.f32 %v853, %v854
    %856 = vadd.xlane.f32.xlu0 %v855
    %v857 = vpop.xlane.xlu0 %856
    %v858 = vmul.f32 %v857, %v847
    %v859 = vadd.f32 %v858, 1e-05
    %v860 = vrsqrt.pop %v859
    %v861 = vmul.f32 %v860, %v859
    %v862 = vmul.f32 %v861, %v860
    %v863 = vmul.f32 0.5, %v862
    %v864 = vsub.f32 1.5, %v863
    %v865 = vmul.f32 %v860, %v864
    %vm866 = vweird.f32 %v859
    %vm867 = vweird.f32 %v860
    %vm868 = vmor %vm866, %vm867
    %v869 = vsel %vm868, %v860, %v865
    %v870 = vmul.f32 %v849, %v869
    %v871 = vmul.f32 %v850, %v869
    %v872 = vperm.slane %v82, 1
    %v873 = vperm.slane %v82, 5
    %v876 = vperm.slane %v872, 1
    %v877 = vperm.slane %v873, 1
    %v878 = vmul.f32 %v870, %v876
    %v879 = vmul.f32 %v871, %v877
    %v880 = vperm.slane %v82, 2
    %v881 = vperm.slane %v82, 6
    %v884 = vperm.slane %v880, 2
    %v885 = vperm.slane %v881, 2
    %v886 = vadd.f32 %v878, %v884
    %v887 = vadd.f32 %v879, %v885
    %v888 = vpack.c.bf16 %v887, %v886
    %v890 = vrot.slane %v888, 3
    %vm891 = vcmask 1040384
    %v894 = vsel %vm891, %v888, %v890
    %896 = vst [vmem:[#allocation10] sm:$0x3] %v894
    // Predicated region
    $region34: #{tpu_custom_call.1} parent=1 // pred_check
      _
    $region35: #{tpu_custom_call.1} parent=1 // pred_check_branch
      %898 = sbr.rel (0) target = $region37
    $region36: #{tpu_custom_call.1} parent=1 // pred_region
      %900 = vsyncadd [#allocation4], 0
      %s902 = sshll.u32 [#allocation10], 4
      %s903 = int_to_ptr.vmem [resolvable:$true] %s902
      %s904 = sshll.u32 %s4, 4
      %s905 = int_to_ptr.hbm [resolvable:$true] %s904
      %907 = dma.vmem_to_hbm [thread:$0]  %s903, 32, %s905, [#allocation4]
    $region37: #{tpu_custom_call.1} parent=1 // pred_fallthru
      _
    // Predicated region
    $region38: #{tpu_custom_call.1} parent=1 // pred_check
      _
    $region39: #{tpu_custom_call.1} parent=1 // pred_check_branch
      %909 = sbr.rel (0) target = $region41
    $region40: #{tpu_custom_call.1} parent=1 // pred_region
      %911 = dma.done [#allocation4], 32
    $region41: #{tpu_custom_call.1} parent=1 // pred_fallthru
      _
    %912 = vsyncpa [#allocation3], 1
    %913 = vsyncpa [#allocation6], 1
    %914 = vsyncpa [#allocation9], 1
    %915 = vsyncpa [#allocation4], 1

</llo_original>
